<compile_context>
chip_gen: v5e
topology: v5e:2x2
jax: 0.10.0
libtpu: 0.0.40
codegen_flags: <defaults>
</compile_context>

<pallas_src>
import functools

import jax
import jax.numpy as jnp
from jax.experimental import pallas as pl
from jax.experimental.pallas import tpu as pltpu

_LANES = 128      # TPU lane width: packed output feature dim padded to this
_SUBLANES = 8     # f32 sublane count: batch rows padded to a multiple of this


def _finetune_kernel(x_ref, w_ref, b_ref, out_ref):
    """Single fused pass: sum over S, one MXU matmul, one lane-dense store.

    x_ref  : (B_pad, S, D) f32
    w_ref  : (D, 128) f32  — packed [W_enc | W_enc@W_cls] / S, zero-padded lanes
    b_ref  : (1, 128) f32  — packed [b_enc | b_enc@W_cls + b_cls], zero-padded
    out_ref: (B_pad, 128) f32 — lanes [0:H] = pooled, [H:H+C] = logits
    """
    sum_x = jnp.sum(x_ref[...], axis=1)                       # (B_pad, D)
    out_ref[...] = jnp.dot(sum_x, w_ref[...],
                           preferred_element_type=jnp.float32) + b_ref[...]


def pack_params(w_enc, b_enc, w_cls, b_cls, seq_len):
    """Precompose mean + encoder + classifier into one affine map (call once).

    pooled = mean_S(x) @ W_enc + b_enc
    logits = pooled @ W_cls + b_cls
      =>  [pooled | logits] = sum_S(x) @ ([W_enc | W_enc @ W_cls] / S)
                              + [b_enc | b_enc @ W_cls + b_cls]
    Exact only because the stand-in encoder/classifier are affine.
    Padded lanes are exactly zero (required so the sliced outputs are exact).
    """
    D, H = w_enc.shape
    C = w_cls.shape[1]
    assert H + C <= _LANES, "packed feature dim must fit one lane tile"
    w_pack = jnp.concatenate([w_enc, w_enc @ w_cls], axis=1) * (1.0 / seq_len)
    b_pack = jnp.concatenate([b_enc, b_enc @ w_cls + b_cls], axis=1)
    w_pad = jnp.zeros((D, _LANES), jnp.float32).at[:, :H + C].set(w_pack)
    b_pad = jnp.zeros((1, _LANES), jnp.float32).at[:, :H + C].set(b_pack)
    return w_pad, b_pad


@functools.partial(jax.jit, static_argnames=("hidden", "num_classes"))
def finetune_forward_packed(x, w_pack, b_pack, *, hidden, num_classes):
    """Jitted forward on pre-packed parameters. Returns (pooled, logits)."""
    B, S, D = x.shape
    B_pad = max(_SUBLANES, ((B + _SUBLANES - 1) // _SUBLANES) * _SUBLANES)
    # Zero-pad batch to a full sublane tile; padded rows only produce the bias
    # row and are sliced away below.  (Fuses with the call under jit.)
    x_pad = jnp.zeros((B_pad, S, D), jnp.float32).at[:B].set(x)

    vmem = pl.BlockSpec(memory_space=pltpu.MemorySpace.VMEM)
    out = pl.pallas_call(
        _finetune_kernel,
        out_shape=jax.ShapeDtypeStruct((B_pad, _LANES), jnp.float32),
        in_specs=[vmem, vmem, vmem],
        out_specs=vmem,
    )(x_pad, w_pack, b_pack)

    pooled = out[:B, :hidden]
    logits = out[:B, hidden:hidden + num_classes]
    return pooled, logits


def finetune_cnn_forward(x, random_s, w_enc, b_enc, w_cls, b_cls):
    """Convenience entry point matching FinetuneCNNModel.forward's signature.

    For repeated calls with fixed parameters, call `pack_params` once and use
    `finetune_forward_packed` directly (the packing is then fully hoisted).
    """
    del random_s  # unused by the PyTorch forward
    H = w_enc.shape[1]
    C = w_cls.shape[1]
    w_pack, b_pack = pack_params(w_enc, b_enc, w_cls, b_cls, x.shape[1])
    return finetune_forward_packed(x, w_pack, b_pack, hidden=H, num_classes=C)


def _init_params(key, D, H, C):
    """Deterministic synthetic parameters (PyTorch-Linear-style uniform init).

    Weights are stored already transposed relative to torch.nn.Linear
    (i.e. (in, out)) so the math computes x @ W + b == torch's x @ W.T + b.
    """
    k1, k2, k3, k4 = jax.random.split(key, 4)
    lim_enc = 1.0 / jnp.sqrt(D)
    lim_cls = 1.0 / jnp.sqrt(H)
    w_enc = jax.random.uniform(k1, (D, H), jnp.float32, -lim_enc, lim_enc)
    b_enc = jax.random.uniform(k2, (1, H), jnp.float32, -lim_enc, lim_enc)
    w_cls = jax.random.uniform(k3, (H, C), jnp.float32, -lim_cls, lim_cls)
    b_cls = jax.random.uniform(k4, (1, C), jnp.float32, -lim_cls, lim_cls)
    return w_enc, b_enc, w_cls, b_cls


if __name__ == "__main__":
    B, S, D = 2, 8, 32      # batch, sequence, input feature dim
    H, C = 32, 1            # encoder hidden dim, classifier output dim

    key = jax.random.PRNGKey(0)
    kx, kr, kp = jax.random.split(key, 3)
    x = jax.random.normal(kx, (B, S, D), jnp.float32)
    random_s = jax.random.normal(kr, (B, S, D), jnp.float32)  # unused by forward
    w_enc, b_enc, w_cls, b_cls = _init_params(kp, D, H, C)

    # Pack parameters ONCE (hoisted out of the per-call path), then run the
    # jitted forward.
    w_pack, b_pack = pack_params(w_enc, b_enc, w_cls, b_cls, S)
    pooled, logits = finetune_forward_packed(x, w_pack, b_pack,
                                             hidden=H, num_classes=C)
    jax.block_until_ready((pooled, logits))

    # Reference in the ORIGINAL op order (per-token encoder -> mean -> classifier)
    feats_ref = jnp.einsum("bsd,dh->bsh", x, w_enc) + b_enc
    pooled_ref = jnp.mean(feats_ref, axis=1)
    logits_ref = pooled_ref @ w_cls + b_cls

    assert pooled.shape == (B, H) and logits.shape == (B, C)
    assert jnp.allclose(pooled, pooled_ref, atol=1e-4, rtol=1e-4)
    assert jnp.allclose(logits, logits_ref, atol=1e-4, rtol=1e-4)

    # Also exercise the convenience entry point (same signature as the module).
    pooled2, logits2 = finetune_cnn_forward(x, random_s, w_enc, b_enc, w_cls, b_cls)
    jax.block_until_ready((pooled2, logits2))
    assert jnp.allclose(pooled2, pooled_ref, atol=1e-4, rtol=1e-4)
    assert jnp.allclose(logits2, logits_ref, atol=1e-4, rtol=1e-4)

    print("KERNEL_OK")
</pallas_src>

<mosaic_0001>
module attributes {stable_mosaic.version = 11 : i64} {
  func.func @_finetune_kernel(%arg0: memref<8x8x32xf32, #tpu.memory_space<vmem>>, %arg1: memref<32x128xf32, #tpu.memory_space<vmem>>, %arg2: memref<1x128xf32, #tpu.memory_space<vmem>>, %arg3: memref<8x128xf32, #tpu.memory_space<vmem>>) attributes {dimension_semantics = [], scalar_prefetch = 0 : i64, scratch_operands = 0 : i64, tpu.core_type = #tpu.core_type<tc>} {
    %c0 = arith.constant 0 : index
    %c0_0 = arith.constant 0 : index
    %c0_1 = arith.constant 0 : index
    %0 = vector.load %arg0[%c0, %c0_0, %c0_1] : memref<8x8x32xf32, #tpu.memory_space<vmem>>, vector<8x8x32xf32>
    %cst = arith.constant dense<0.000000e+00> : vector<8x32xf32>
    %1 = vector.multi_reduction <add>, %0, %cst [1] : vector<8x8x32xf32> to vector<8x32xf32>
    %c0_2 = arith.constant 0 : index
    %c0_3 = arith.constant 0 : index
    %2 = vector.load %arg1[%c0_2, %c0_3] : memref<32x128xf32, #tpu.memory_space<vmem>>, vector<32x128xf32>
    %cst_4 = arith.constant dense<0.000000e+00> : vector<8x128xf32>
    %3 = tpu.matmul %1, %2, %cst_4 {dimension_numbers = #tpu.dot_dimension_numbers<[1], [0], [0], [1], [0, 0, 1, 1], [], []>} : vector<8x32xf32>, vector<32x128xf32>, vector<8x128xf32> -> vector<8x128xf32>
    %c0_5 = arith.constant 0 : index
    %c0_6 = arith.constant 0 : index
    %4 = vector.load %arg2[%c0_5, %c0_6] : memref<1x128xf32, #tpu.memory_space<vmem>>, vector<1x128xf32>
    %5 = vector.broadcast %4 : vector<1x128xf32> to vector<8x128xf32>
    %6 = arith.addf %3, %5 : vector<8x128xf32>
    %c0_7 = arith.constant 0 : index
    %c0_8 = arith.constant 0 : index
    %7 = vector.load %arg3[%c0_7, %c0_8] : memref<8x128xf32, #tpu.memory_space<vmem>>, vector<8x128xf32>
    tpu.vector_store %arg3[%c0_7, %c0_8], %6 {strides = array<i32>} : memref<8x128xf32, #tpu.memory_space<vmem>>, vector<8x128xf32>,
    return
  }
}

</mosaic_0001>

<llo_original>
// kernel: finetune_forward_packed.1
$region0: #{finetune_forward_packed.1}
  #allocation0 [shape = 'u32[]', space=smem, size = 0x4, offset = 0x4, fixed_abs, tag = 'smem constant byte address 0x4 - core index']
  #allocation1 [shape = 'u32[72,128]{1,0:T(1,128)}', space=vmem, size = 0x9000, scoped, tag = 'internal scratch']
  %s0 = inlined_call_operand.vmem [shape: f32[8,8,32], index: 0, kind: input, shape index: {}]
  %s1 = inlined_call_operand.vmem [shape: f32[32,128], index: 1, kind: input, shape index: {}]
  %s2 = inlined_call_operand.vmem [shape: f32[1,128], index: 2, kind: input, shape index: {}]
  %s3 = inlined_call_operand.vmem [shape: f32[8,128], index: 3, kind: output, shape index: {}]
  %s4 = sld [smem:[#allocation0]]
  $region22: #{finetune_forward_packed.1} parent=0
    _
  %s6 = ssub.s32 1, %s4
  %s7 = scalar_select 0, %s6, %s4
  // Predicated region
  $region2: #{finetune_forward_packed.1} parent=0 // pred_check
    _
  $region3: #{finetune_forward_packed.1} parent=0 // pred_check_branch
    %9 = sbr.rel (0) target = $region5
  $region4: #{finetune_forward_packed.1} parent=0 // pred_region
    _
  $region5: #{finetune_forward_packed.1} parent=0 // pred_fallthru
    _
  // Predicated region
  $region6: #{finetune_forward_packed.1} parent=0 // pred_check
    _
  $region7: #{finetune_forward_packed.1} parent=0 // pred_check_branch
    %11 = sbr.rel (0) target = $region9
  $region8: #{finetune_forward_packed.1} parent=0 // pred_region
    _
  $region9: #{finetune_forward_packed.1} parent=0 // pred_fallthru
    _
  // Predicated region
  $region10: #{finetune_forward_packed.1} parent=0 // pred_check
    _
  $region11: #{finetune_forward_packed.1} parent=0 // pred_check_branch
    %13 = sbr.rel (0) target = $region13
  $region12: #{finetune_forward_packed.1} parent=0 // pred_region
    _
  $region13: #{finetune_forward_packed.1} parent=0 // pred_fallthru
    _
  %v14 = vld [vmem:[%s0] sm:$0xff]
  %v15 = vld [vmem:[%s0 + $0x8] sm:$0xff]
  %v16 = vld [vmem:[%s0 + $0x10] sm:$0xff]
  %v17 = vld [vmem:[%s0 + $0x18] sm:$0xff]
  %v18 = vld [vmem:[%s0 + $0x20] sm:$0xff]
  %v19 = vld [vmem:[%s0 + $0x28] sm:$0xff]
  %v20 = vld [vmem:[%s0 + $0x30] sm:$0xff]
  %v21 = vld [vmem:[%s0 + $0x38] sm:$0xff]
  %vm22 = vcmask 261120
  %v23 = vsel %vm22, %v14, 0.0
  %v24 = vrot.slane %v23, 4
  %v25 = vadd.f32 %v23, %v24
  %v26 = vrot.slane %v25, 2
  %v27 = vadd.f32 %v25, %v26
  %v28 = vrot.slane %v27, 1
  %v29 = vadd.f32 %v27, %v28
  %v30 = vsel %vm22, %v15, 0.0
  %v31 = vrot.slane %v30, 4
  %v32 = vadd.f32 %v30, %v31
  %v33 = vrot.slane %v32, 2
  %v34 = vadd.f32 %v32, %v33
  %v35 = vrot.slane %v34, 1
  %v36 = vadd.f32 %v34, %v35
  %v37 = vsel %vm22, %v16, 0.0
  %v38 = vrot.slane %v37, 4
  %v39 = vadd.f32 %v37, %v38
  %v40 = vrot.slane %v39, 2
  %v41 = vadd.f32 %v39, %v40
  %v42 = vrot.slane %v41, 1
  %v43 = vadd.f32 %v41, %v42
  %v44 = vsel %vm22, %v17, 0.0
  %v45 = vrot.slane %v44, 4
  %v46 = vadd.f32 %v44, %v45
  %v47 = vrot.slane %v46, 2
  %v48 = vadd.f32 %v46, %v47
  %v49 = vrot.slane %v48, 1
  %v50 = vadd.f32 %v48, %v49
  %v51 = vsel %vm22, %v18, 0.0
  %v52 = vrot.slane %v51, 4
  %v53 = vadd.f32 %v51, %v52
  %v54 = vrot.slane %v53, 2
  %v55 = vadd.f32 %v53, %v54
  %v56 = vrot.slane %v55, 1
  %v57 = vadd.f32 %v55, %v56
  %v58 = vsel %vm22, %v19, 0.0
  %v59 = vrot.slane %v58, 4
  %v60 = vadd.f32 %v58, %v59
  %v61 = vrot.slane %v60, 2
  %v62 = vadd.f32 %v60, %v61
  %v63 = vrot.slane %v62, 1
  %v64 = vadd.f32 %v62, %v63
  %v65 = vsel %vm22, %v20, 0.0
  %v66 = vrot.slane %v65, 4
  %v67 = vadd.f32 %v65, %v66
  %v68 = vrot.slane %v67, 2
  %v69 = vadd.f32 %v67, %v68
  %v70 = vrot.slane %v69, 1
  %v71 = vadd.f32 %v69, %v70
  %v72 = vsel %vm22, %v21, 0.0
  %v73 = vrot.slane %v72, 4
  %v74 = vadd.f32 %v72, %v73
  %v75 = vrot.slane %v74, 2
  %v76 = vadd.f32 %v74, %v75
  %v77 = vrot.slane %v76, 1
  %v78 = vadd.f32 %v76, %v77
  %v79 = vld [vmem:[%s1] sm:$0xff]
  %v80 = vld [vmem:[%s1 + $0x8] sm:$0xff]
  %v81 = vld [vmem:[%s1 + $0x10] sm:$0xff]
  %v82 = vld [vmem:[%s1 + $0x18] sm:$0xff]
  %v83 = vld [vmem:[%s2] sm:$0x1]
  %v85 = vperm.slane %v83, 0
  %vm95 = vcmask 1041409
  %v96 = vsel %vm95, %v36, %v29
  %vm97 = vcmask 1042434
  %v98 = vsel %vm97, %v43, %v96
  %vm99 = vcmask 1043459
  %v100 = vsel %vm99, %v50, %v98
  %vm101 = vcmask 1044484
  %v102 = vsel %vm101, %v57, %v100
  %vm103 = vcmask 1045509
  %v104 = vsel %vm103, %v64, %v102
  %vm105 = vcmask 1046534
  %v106 = vsel %vm105, %v71, %v104
  %vm107 = vcmask 1047559
  %v108 = vsel %vm107, %v78, %v106
  %v109 = vsel %vm22, %v108, 0
  %111 = vmatpush.msra.mxu0 0.0
  %112 = vmatpush.msra.mxu0 0.0
  %113 = vmatpush.msra.mxu0 0.0
  %114 = vmatpush.msra.mxu0 0.0
  %115 = vmatpush.msra.mxu0 0.0
  %116 = vmatpush.msra.mxu0 0.0
  %117 = vmatpush.msra.mxu0 0.0
  %118 = vmatpush.msra.mxu0 0.0
  %119 = vmatpush.msra.mxu0 0.0
  %120 = vmatpush.msra.mxu0 0.0
  %121 = vmatpush.msra.mxu0 0.0
  %122 = vmatpush.msra.mxu0 0.0
  %123 = vmatpush.msra.mxu0 %v82
  %124 = vmatpush.msra.mxu0 %v81
  %125 = vmatpush.msra.mxu0 %v80
  %126 = vmatpush.msra.mxu0 %v79
  %127 = vmatmul.f32.gmra.mxu0 %v109
  %v128 = vpop.f32.mrf.mxu0
  %v129 = vadd.f32 %v85, %v128
  %130 = vdwg.mxu0
  %131 = vst [vmem:[%s3] sm:$0xff] %v129
  // Predicated region
  $region14: #{finetune_forward_packed.1} parent=0 // pred_check
    _
  $region15: #{finetune_forward_packed.1} parent=0 // pred_check_branch
    %133 = sbr.rel (0) target = $region17
  $region16: #{finetune_forward_packed.1} parent=0 // pred_region
    _
  $region17: #{finetune_forward_packed.1} parent=0 // pred_fallthru
    _
  // Predicated region
  $region18: #{finetune_forward_packed.1} parent=0 // pred_check
    _
  $region19: #{finetune_forward_packed.1} parent=0 // pred_check_branch
    %135 = sbr.rel (0) target = $region21
  $region20: #{finetune_forward_packed.1} parent=0 // pred_region
    _
  $region21: #{finetune_forward_packed.1} parent=0 // pred_fallthru
    _

</llo_original>
